<compile_context>
chip_gen: v6e
topology: v6e:2x2x1
jax: 0.10.0
libtpu: 0.0.40
codegen_flags: <defaults>
</compile_context>

<pallas_src>
import math
from functools import partial

import jax
import jax.numpy as jnp
from jax import lax
from jax.experimental import pallas as pl
from jax.experimental.pallas import tpu as pltpu


def _var_unbiased(x):
    # torch.var default: unbiased (N-1 denominator), over last axis.
    mean = jnp.mean(x, axis=-1, keepdims=True)
    n = x.shape[-1]
    return jnp.sum((x - mean) ** 2, axis=-1, keepdims=True) / (n - 1)


def _gelu_exact(x):
    # torch.nn.GELU() default is the exact erf formulation.
    return 0.5 * x * (1.0 + lax.erf(x * (1.0 / math.sqrt(2.0))))


def casual_attention_kernel(x_ref, last_ref, wq_ref, wk_ref, wv_ref,
                            wht_ref, wft_ref, out_ref, oattn_ref, *,
                            beta, seq_len, d_model, batch_tile, matmul_dtype):
    S, D, Bt = seq_len, d_model, batch_tile

    x = x_ref[...]        # (Bt*S, D) f32; row r = (batch b, seq s), r = b*S + s
    last = last_ref[...]  # (Bt*S, D) f32
    wq = wq_ref[...]      # (S, S)   matmul_dtype
    wk = wk_ref[...]      # (S, S)
    wv = wv_ref[...]      # (S, S)
    wht = wht_ref[...]    # (D, D)   = Wh.T (pre-transposed host-side)
    wft = wft_ref[...]    # (D, D)   = FFN.T

    # Pre-scale: x * sqrt(1 / (var(x) + 1e-3)), per (b, s) row over D.
    sigma = _var_unbiased(x)
    xn = x * lax.rsqrt(sigma + 0.001)

    # Fold the batch tile into the lane axis: (S, Bt*D) slab, so the three
    # projections become single (S, S) @ (S, Bt*D) matmuls (lane-dense output).
    xn_m = xn.astype(matmul_dtype)
    if Bt > 1:
        xn_slab = jnp.concatenate(
            [xn_m[b * S:(b + 1) * S, :] for b in range(Bt)], axis=-1)
    else:
        xn_slab = xn_m

    # PyTorch computes on x.transpose(-1,-2); equivalently (no in-kernel
    # transposes): q.T = Wq @ xn, k.T = Wk @ xn, v = Wv @ xn  -> (S, Bt*D).
    qT = jnp.dot(wq, xn_slab, preferred_element_type=jnp.float32)
    kT = jnp.dot(wk, xn_slab, preferred_element_type=jnp.float32)
    v = jnp.dot(wv, xn_slab, preferred_element_type=jnp.float32)

    inv_sqrt_s = 1.0 / math.sqrt(S)
    chips_parts = []
    for b in range(Bt):   # static unroll over the batch tile (S x S per step)
        qb = qT[:, b * D:(b + 1) * D].astype(matmul_dtype)
        kb = kT[:, b * D:(b + 1) * D].astype(matmul_dtype)
        vb = v[:, b * D:(b + 1) * D].astype(matmul_dtype)

        # scores[i, j] = (1/sqrt(S)) * sum_d qT[i, d] * kT[j, d]
        scores = lax.dot_general(qb, kb, (((1,), (1,)), ((), ())),
                                 preferred_element_type=jnp.float32)
        scores = scores * inv_sqrt_s

        # softmax(scores.transpose(-1,-2), dim=-1).transpose(-1,-2)
        #   == normalize each column over the rows (axis 0).
        m = jnp.max(scores, axis=0, keepdims=True)
        e = jnp.exp(scores - m)
        sw = e * pl.reciprocal(jnp.sum(e, axis=0, keepdims=True), approx=True)

        chips_parts.append(
            jnp.dot(sw.astype(matmul_dtype), vb,
                    preferred_element_type=jnp.float32))        # (S, D)

    chips = (jnp.concatenate(chips_parts, axis=0)
             if Bt > 1 else chips_parts[0])                      # (Bt*S, D)

    # Wh linear (chips @ Wh.T) as one fused (Bt*S, D) @ (D, D) matmul.
    h = jnp.dot(chips.astype(matmul_dtype), wht,
                preferred_element_type=jnp.float32)

    origin_attn = beta * h + (1.0 - beta) * last
    attn = origin_attn + x

    attn_sigma = _var_unbiased(attn)
    norm_attn = attn * lax.rsqrt(attn_sigma + 0.001)

    # FFN linear (norm_attn @ FFN.T), residual, exact GELU.
    ffn = jnp.dot(norm_attn.astype(matmul_dtype), wft,
                  preferred_element_type=jnp.float32)
    out = _gelu_exact(ffn + attn)

    out_ref[...] = out
    oattn_ref[...] = origin_attn


def casual_attention(x, last_attn, wq, wk, wv, wh, wf, beta=0.9, *,
                     batch_tile=None, matmul_dtype=jnp.float32,
                     vmem_limit_bytes=48 * 1024 * 1024):
    B, S, D = x.shape

    if batch_tile is None:
        batch_tile = B if B <= 8 else math.gcd(B, 8)
    if B % batch_tile != 0:
        raise ValueError("batch_tile must divide the batch size")
    n_steps = B // batch_tile
    row_block = batch_tile * S

    # Wrapper-side layout plumbing (free relative to kernel time):
    #   * flatten (B, S, D) -> (B*S, D) so the kernel works on slabs,
    #   * pre-transpose the D-side weights so the kernel runs plain matmuls,
    #   * optionally store weights in bf16 (halves weight VMEM footprint).
    x_flat = x.reshape(B * S, D)
    last_flat = last_attn.reshape(B * S, D)
    wq_c = wq.astype(matmul_dtype)
    wk_c = wk.astype(matmul_dtype)
    wv_c = wv.astype(matmul_dtype)
    wh_t = wh.T.astype(matmul_dtype)
    wf_t = wf.T.astype(matmul_dtype)

    kernel = partial(casual_attention_kernel, beta=float(beta), seq_len=S,
                     d_model=D, batch_tile=batch_tile,
                     matmul_dtype=matmul_dtype)

    io_spec = pl.BlockSpec((row_block, D), lambda i: (i, 0))
    ws_spec = pl.BlockSpec((S, S), lambda i: (0, 0))
    wd_spec = pl.BlockSpec((D, D), lambda i: (0, 0))

    # TODO(synk): for production-scale S, the S x S score matrix should be
    # tiled with an online (flash-style) softmax; at these shapes everything
    # fits comfortably under the explicit VMEM limit below.
    out_flat, oattn_flat = pl.pallas_call(
        kernel,
        out_shape=(jax.ShapeDtypeStruct((B * S, D), jnp.float32),
                   jax.ShapeDtypeStruct((B * S, D), jnp.float32)),
        grid_spec=pltpu.PrefetchScalarGridSpec(
            num_scalar_prefetch=0,
            grid=(n_steps,),
            in_specs=[io_spec, io_spec,
                      ws_spec, ws_spec, ws_spec,
                      wd_spec, wd_spec],
            out_specs=[io_spec, io_spec],
        ),
        compiler_params=pltpu.CompilerParams(
            dimension_semantics=("parallel",),
            vmem_limit_bytes=vmem_limit_bytes),
    )(x_flat, last_flat, wq_c, wk_c, wv_c, wh_t, wf_t)

    return out_flat.reshape(B, S, D), oattn_flat.reshape(B, S, D)


def casual_attention_reference(x, last_attn, wq, wk, wv, wh, wf, beta=0.9):
    """Plain-JAX transcription of the PyTorch forward, for verification."""
    S = x.shape[1]
    sigma = jnp.var(x, axis=-1, keepdims=True, ddof=1)
    xn = x * jnp.sqrt(1.0 / (sigma + 0.001))
    xt = jnp.swapaxes(xn, -1, -2)                      # (B, D, S)
    q = xt @ wq.T
    k = xt @ wk.T
    v = jnp.swapaxes(xt @ wv.T, -1, -2)                # (B, S, D)
    scores = jnp.sqrt(1.0 / S) * (jnp.swapaxes(q, -1, -2) @ k)
    sw = jnp.swapaxes(
        jax.nn.softmax(jnp.swapaxes(scores, -1, -2), axis=-1), -1, -2)
    chips = sw @ v
    origin_attn = beta * (chips @ wh.T) + (1.0 - beta) * last_attn
    attn = origin_attn + x
    asig = jnp.var(attn, axis=-1, keepdims=True, ddof=1)
    norm_attn = attn * jnp.sqrt(1.0 / (asig + 0.001))
    out = jax.nn.gelu(norm_attn @ wf.T + attn, approximate=False)
    return out, origin_attn


if __name__ == "__main__":
    B, S, D = 2, 8, 32
    beta = 0.9

    key = jax.random.PRNGKey(0)
    kx, kl, kq, kk, kv, kh, kf = jax.random.split(key, 7)

    x = jax.random.normal(kx, (B, S, D), dtype=jnp.float32)
    last_attn = jax.random.normal(kl, (B, S, D), dtype=jnp.float32)

    # Deterministic weight init mirroring weight_initiate():
    #   Wq/Wk/Wv ~ N(0, 1/S); Wh xavier-normal with relu gain; FFN default-ish.
    wq = jax.random.normal(kq, (S, S), dtype=jnp.float32) * (1.0 / S)
    wk = jax.random.normal(kk, (S, S), dtype=jnp.float32) * (1.0 / S)
    wv = jax.random.normal(kv, (S, S), dtype=jnp.float32) * (1.0 / S)
    xavier_std = math.sqrt(2.0) * math.sqrt(2.0 / (D + D))
    wh = jax.random.normal(kh, (D, D), dtype=jnp.float32) * xavier_std
    wf = jax.random.normal(kf, (D, D), dtype=jnp.float32) * math.sqrt(1.0 / D)

    out_ref, oattn_ref = casual_attention_reference(
        x, last_attn, wq, wk, wv, wh, wf, beta)

    # f32 matmul path (softmax uses approx EUP reciprocal -> tight tolerance).
    out, origin_attn = casual_attention(x, last_attn, wq, wk, wv, wh, wf, beta)
    jax.block_until_ready((out, origin_attn))
    assert jnp.allclose(out, out_ref, atol=3e-3, rtol=3e-3)
    assert jnp.allclose(origin_attn, oattn_ref, atol=3e-3, rtol=3e-3)

    # bf16 matmul-operand path (f32 accumulation) -- looser tolerance.
    out_b, oattn_b = casual_attention(x, last_attn, wq, wk, wv, wh, wf, beta,
                                      matmul_dtype=jnp.bfloat16)
    jax.block_until_ready((out_b, oattn_b))
    assert jnp.allclose(out_b, out_ref, atol=1.5e-1, rtol=1.5e-1)
    assert jnp.allclose(oattn_b, oattn_ref, atol=1.5e-1, rtol=1.5e-1)

    print("KERNEL_OK")
</pallas_src>

<mosaic_0001>
module attributes {stable_mosaic.version = 11 : i64} {
  func.func @casual_attention_kernel(%arg0: i32, %arg1: memref<16x32xf32, #tpu.memory_space<vmem>>, %arg2: memref<16x32xf32, #tpu.memory_space<vmem>>, %arg3: memref<8x8xf32, #tpu.memory_space<vmem>>, %arg4: memref<8x8xf32, #tpu.memory_space<vmem>>, %arg5: memref<8x8xf32, #tpu.memory_space<vmem>>, %arg6: memref<32x32xf32, #tpu.memory_space<vmem>>, %arg7: memref<32x32xf32, #tpu.memory_space<vmem>>, %arg8: memref<16x32xf32, #tpu.memory_space<vmem>>, %arg9: memref<16x32xf32, #tpu.memory_space<vmem>>) attributes {dimension_semantics = [#tpu.dimension_semantics<parallel>], iteration_bounds = array<i64: 1>, scalar_prefetch = 0 : i64, scratch_operands = 0 : i64, tpu.core_type = #tpu.core_type<tc>, window_params = [{transform_indices = @transform_0, window_bounds = array<i64: 16, 32>}, {transform_indices = @transform_1, window_bounds = array<i64: 16, 32>}, {pipeline_mode = #tpu.pipeline_mode<synchronous>, transform_indices = @transform_2, window_bounds = array<i64: 8, 8>}, {pipeline_mode = #tpu.pipeline_mode<synchronous>, transform_indices = @transform_3, window_bounds = array<i64: 8, 8>}, {pipeline_mode = #tpu.pipeline_mode<synchronous>, transform_indices = @transform_4, window_bounds = array<i64: 8, 8>}, {pipeline_mode = #tpu.pipeline_mode<synchronous>, transform_indices = @transform_5, window_bounds = array<i64: 32, 32>}, {pipeline_mode = #tpu.pipeline_mode<synchronous>, transform_indices = @transform_6, window_bounds = array<i64: 32, 32>}, {transform_indices = @transform_7, window_bounds = array<i64: 16, 32>}, {transform_indices = @transform_8, window_bounds = array<i64: 16, 32>}]} {
    %c0 = arith.constant 0 : index
    %c0_0 = arith.constant 0 : index
    %0 = vector.load %arg1[%c0, %c0_0] : memref<16x32xf32, #tpu.memory_space<vmem>>, vector<16x32xf32>
    %c0_1 = arith.constant 0 : index
    %c0_2 = arith.constant 0 : index
    %1 = vector.load %arg2[%c0_1, %c0_2] : memref<16x32xf32, #tpu.memory_space<vmem>>, vector<16x32xf32>
    %c0_3 = arith.constant 0 : index
    %c0_4 = arith.constant 0 : index
    %2 = vector.load %arg3[%c0_3, %c0_4] : memref<8x8xf32, #tpu.memory_space<vmem>>, vector<8x8xf32>
    %c0_5 = arith.constant 0 : index
    %c0_6 = arith.constant 0 : index
    %3 = vector.load %arg4[%c0_5, %c0_6] : memref<8x8xf32, #tpu.memory_space<vmem>>, vector<8x8xf32>
    %c0_7 = arith.constant 0 : index
    %c0_8 = arith.constant 0 : index
    %4 = vector.load %arg5[%c0_7, %c0_8] : memref<8x8xf32, #tpu.memory_space<vmem>>, vector<8x8xf32>
    %c0_9 = arith.constant 0 : index
    %c0_10 = arith.constant 0 : index
    %5 = vector.load %arg6[%c0_9, %c0_10] : memref<32x32xf32, #tpu.memory_space<vmem>>, vector<32x32xf32>
    %c0_11 = arith.constant 0 : index
    %c0_12 = arith.constant 0 : index
    %6 = vector.load %arg7[%c0_11, %c0_12] : memref<32x32xf32, #tpu.memory_space<vmem>>, vector<32x32xf32>
    %cst = arith.constant dense<0.000000e+00> : vector<16xf32>
    %7 = vector.multi_reduction <add>, %0, %cst [1] : vector<16x32xf32> to vector<16xf32>
    %8 = vector.shape_cast %7 : vector<16xf32> to vector<16x1xf32>
    %cst_13 = arith.constant 3.200000e+01 : f32
    %9 = vector.broadcast %cst_13 : f32 to vector<16x1xf32>
    %10 = arith.divf %8, %9 : vector<16x1xf32>
    %11 = vector.broadcast %10 : vector<16x1xf32> to vector<16x32xf32>
    %12 = arith.subf %0, %11 : vector<16x32xf32>
    %13 = arith.mulf %12, %12 : vector<16x32xf32>
    %cst_14 = arith.constant dense<0.000000e+00> : vector<16xf32>
    %14 = vector.multi_reduction <add>, %13, %cst_14 [1] : vector<16x32xf32> to vector<16xf32>
    %15 = vector.shape_cast %14 : vector<16xf32> to vector<16x1xf32>
    %cst_15 = arith.constant 3.100000e+01 : f32
    %16 = vector.broadcast %cst_15 : f32 to vector<16x1xf32>
    %17 = arith.divf %15, %16 : vector<16x1xf32>
    %cst_16 = arith.constant 1.000000e-03 : f32
    %18 = vector.broadcast %cst_16 : f32 to vector<16x1xf32>
    %19 = arith.addf %17, %18 : vector<16x1xf32>
    %20 = math.rsqrt %19 : vector<16x1xf32>
    %21 = vector.broadcast %20 : vector<16x1xf32> to vector<16x32xf32>
    %22 = arith.mulf %0, %21 : vector<16x32xf32>
    %23 = vector.extract_strided_slice %22 {offsets = [0, 0], sizes = [8, 32], strides = [1, 1]} : vector<16x32xf32> to vector<8x32xf32>
    %24 = vector.extract_strided_slice %22 {offsets = [8, 0], sizes = [8, 32], strides = [1, 1]} : vector<16x32xf32> to vector<8x32xf32>
    %25 = tpu.concatenate %23, %24 in 1 : vector<8x32xf32>, vector<8x32xf32> -> vector<8x64xf32>
    %cst_17 = arith.constant dense<0.000000e+00> : vector<8x64xf32>
    %26 = tpu.matmul %2, %25, %cst_17 {dimension_numbers = #tpu.dot_dimension_numbers<[1], [0], [0], [1], [0, 0, 1, 1], [], []>} : vector<8x8xf32>, vector<8x64xf32>, vector<8x64xf32> -> vector<8x64xf32>
    %cst_18 = arith.constant dense<0.000000e+00> : vector<8x64xf32>
    %27 = tpu.matmul %3, %25, %cst_18 {dimension_numbers = #tpu.dot_dimension_numbers<[1], [0], [0], [1], [0, 0, 1, 1], [], []>} : vector<8x8xf32>, vector<8x64xf32>, vector<8x64xf32> -> vector<8x64xf32>
    %cst_19 = arith.constant dense<0.000000e+00> : vector<8x64xf32>
    %28 = tpu.matmul %4, %25, %cst_19 {dimension_numbers = #tpu.dot_dimension_numbers<[1], [0], [0], [1], [0, 0, 1, 1], [], []>} : vector<8x8xf32>, vector<8x64xf32>, vector<8x64xf32> -> vector<8x64xf32>
    %29 = vector.extract_strided_slice %26 {offsets = [0, 0], sizes = [8, 32], strides = [1, 1]} : vector<8x64xf32> to vector<8x32xf32>
    %30 = vector.extract_strided_slice %27 {offsets = [0, 0], sizes = [8, 32], strides = [1, 1]} : vector<8x64xf32> to vector<8x32xf32>
    %31 = vector.extract_strided_slice %28 {offsets = [0, 0], sizes = [8, 32], strides = [1, 1]} : vector<8x64xf32> to vector<8x32xf32>
    %cst_20 = arith.constant dense<0.000000e+00> : vector<8x8xf32>
    %32 = tpu.matmul %29, %30, %cst_20 {dimension_numbers = #tpu.dot_dimension_numbers<[1], [1], [0], [0], [0, 0, 1, 0], [], []>} : vector<8x32xf32>, vector<8x32xf32>, vector<8x8xf32> -> vector<8x8xf32>
    %cst_21 = arith.constant 0.353553385 : f32
    %33 = vector.broadcast %cst_21 : f32 to vector<8x8xf32>
    %34 = arith.mulf %32, %33 : vector<8x8xf32>
    %cst_22 = arith.constant dense<0xFF800000> : vector<8xf32>
    %35 = vector.multi_reduction <maximumf>, %34, %cst_22 [0] : vector<8x8xf32> to vector<8xf32>
    %36 = vector.shape_cast %35 : vector<8xf32> to vector<1x8xf32>
    %37 = vector.broadcast %36 : vector<1x8xf32> to vector<8x8xf32>
    %38 = arith.subf %34, %37 : vector<8x8xf32>
    %39 = math.exp %38 : vector<8x8xf32>
    %cst_23 = arith.constant dense<0.000000e+00> : vector<8xf32>
    %40 = vector.multi_reduction <add>, %39, %cst_23 [0] : vector<8x8xf32> to vector<8xf32>
    %41 = vector.shape_cast %40 : vector<8xf32> to vector<1x8xf32>
    %42 = tpu.reciprocal %41 {approx = true} : vector<1x8xf32> -> vector<1x8xf32>
    %43 = vector.broadcast %42 : vector<1x8xf32> to vector<8x8xf32>
    %44 = arith.mulf %39, %43 : vector<8x8xf32>
    %cst_24 = arith.constant dense<0.000000e+00> : vector<8x32xf32>
    %45 = tpu.matmul %44, %31, %cst_24 {dimension_numbers = #tpu.dot_dimension_numbers<[1], [0], [0], [1], [0, 0, 1, 1], [], []>} : vector<8x8xf32>, vector<8x32xf32>, vector<8x32xf32> -> vector<8x32xf32>
    %46 = vector.extract_strided_slice %26 {offsets = [0, 32], sizes = [8, 32], strides = [1, 1]} : vector<8x64xf32> to vector<8x32xf32>
    %47 = vector.extract_strided_slice %27 {offsets = [0, 32], sizes = [8, 32], strides = [1, 1]} : vector<8x64xf32> to vector<8x32xf32>
    %48 = vector.extract_strided_slice %28 {offsets = [0, 32], sizes = [8, 32], strides = [1, 1]} : vector<8x64xf32> to vector<8x32xf32>
    %cst_25 = arith.constant dense<0.000000e+00> : vector<8x8xf32>
    %49 = tpu.matmul %46, %47, %cst_25 {dimension_numbers = #tpu.dot_dimension_numbers<[1], [1], [0], [0], [0, 0, 1, 0], [], []>} : vector<8x32xf32>, vector<8x32xf32>, vector<8x8xf32> -> vector<8x8xf32>
    %cst_26 = arith.constant 0.353553385 : f32
    %50 = vector.broadcast %cst_26 : f32 to vector<8x8xf32>
    %51 = arith.mulf %49, %50 : vector<8x8xf32>
    %cst_27 = arith.constant dense<0xFF800000> : vector<8xf32>
    %52 = vector.multi_reduction <maximumf>, %51, %cst_27 [0] : vector<8x8xf32> to vector<8xf32>
    %53 = vector.shape_cast %52 : vector<8xf32> to vector<1x8xf32>
    %54 = vector.broadcast %53 : vector<1x8xf32> to vector<8x8xf32>
    %55 = arith.subf %51, %54 : vector<8x8xf32>
    %56 = math.exp %55 : vector<8x8xf32>
    %cst_28 = arith.constant dense<0.000000e+00> : vector<8xf32>
    %57 = vector.multi_reduction <add>, %56, %cst_28 [0] : vector<8x8xf32> to vector<8xf32>
    %58 = vector.shape_cast %57 : vector<8xf32> to vector<1x8xf32>
    %59 = tpu.reciprocal %58 {approx = true} : vector<1x8xf32> -> vector<1x8xf32>
    %60 = vector.broadcast %59 : vector<1x8xf32> to vector<8x8xf32>
    %61 = arith.mulf %56, %60 : vector<8x8xf32>
    %cst_29 = arith.constant dense<0.000000e+00> : vector<8x32xf32>
    %62 = tpu.matmul %61, %48, %cst_29 {dimension_numbers = #tpu.dot_dimension_numbers<[1], [0], [0], [1], [0, 0, 1, 1], [], []>} : vector<8x8xf32>, vector<8x32xf32>, vector<8x32xf32> -> vector<8x32xf32>
    %63 = tpu.concatenate %45, %62 in 0 : vector<8x32xf32>, vector<8x32xf32> -> vector<16x32xf32>
    %cst_30 = arith.constant dense<0.000000e+00> : vector<16x32xf32>
    %64 = tpu.matmul %63, %5, %cst_30 {dimension_numbers = #tpu.dot_dimension_numbers<[1], [0], [0], [1], [0, 0, 1, 1], [], []>} : vector<16x32xf32>, vector<32x32xf32>, vector<16x32xf32> -> vector<16x32xf32>
    %cst_31 = arith.constant 0.899999976 : f32
    %65 = vector.broadcast %cst_31 : f32 to vector<16x32xf32>
    %66 = arith.mulf %65, %64 : vector<16x32xf32>
    %cst_32 = arith.constant 1.000000e-01 : f32
    %67 = vector.broadcast %cst_32 : f32 to vector<16x32xf32>
    %68 = arith.mulf %67, %1 : vector<16x32xf32>
    %69 = arith.addf %66, %68 : vector<16x32xf32>
    %70 = arith.addf %69, %0 : vector<16x32xf32>
    %cst_33 = arith.constant dense<0.000000e+00> : vector<16xf32>
    %71 = vector.multi_reduction <add>, %70, %cst_33 [1] : vector<16x32xf32> to vector<16xf32>
    %72 = vector.shape_cast %71 : vector<16xf32> to vector<16x1xf32>
    %cst_34 = arith.constant 3.200000e+01 : f32
    %73 = vector.broadcast %cst_34 : f32 to vector<16x1xf32>
    %74 = arith.divf %72, %73 : vector<16x1xf32>
    %75 = vector.broadcast %74 : vector<16x1xf32> to vector<16x32xf32>
    %76 = arith.subf %70, %75 : vector<16x32xf32>
    %77 = arith.mulf %76, %76 : vector<16x32xf32>
    %cst_35 = arith.constant dense<0.000000e+00> : vector<16xf32>
    %78 = vector.multi_reduction <add>, %77, %cst_35 [1] : vector<16x32xf32> to vector<16xf32>
    %79 = vector.shape_cast %78 : vector<16xf32> to vector<16x1xf32>
    %cst_36 = arith.constant 3.100000e+01 : f32
    %80 = vector.broadcast %cst_36 : f32 to vector<16x1xf32>
    %81 = arith.divf %79, %80 : vector<16x1xf32>
    %cst_37 = arith.constant 1.000000e-03 : f32
    %82 = vector.broadcast %cst_37 : f32 to vector<16x1xf32>
    %83 = arith.addf %81, %82 : vector<16x1xf32>
    %84 = math.rsqrt %83 : vector<16x1xf32>
    %85 = vector.broadcast %84 : vector<16x1xf32> to vector<16x32xf32>
    %86 = arith.mulf %70, %85 : vector<16x32xf32>
    %cst_38 = arith.constant dense<0.000000e+00> : vector<16x32xf32>
    %87 = tpu.matmul %86, %6, %cst_38 {dimension_numbers = #tpu.dot_dimension_numbers<[1], [0], [0], [1], [0, 0, 1, 1], [], []>} : vector<16x32xf32>, vector<32x32xf32>, vector<16x32xf32> -> vector<16x32xf32>
    %88 = arith.addf %87, %70 : vector<16x32xf32>
    %cst_39 = arith.constant 5.000000e-01 : f32
    %89 = vector.broadcast %cst_39 : f32 to vector<16x32xf32>
    %90 = arith.mulf %89, %88 : vector<16x32xf32>
    %cst_40 = arith.constant 0.707106769 : f32
    %91 = vector.broadcast %cst_40 : f32 to vector<16x32xf32>
    %92 = arith.mulf %88, %91 : vector<16x32xf32>
    %93 = math.erf %92 : vector<16x32xf32>
    %cst_41 = arith.constant 1.000000e+00 : f32
    %94 = vector.broadcast %cst_41 : f32 to vector<16x32xf32>
    %95 = arith.addf %94, %93 : vector<16x32xf32>
    %96 = arith.mulf %90, %95 : vector<16x32xf32>
    %c0_42 = arith.constant 0 : index
    %c0_43 = arith.constant 0 : index
    %97 = vector.load %arg8[%c0_42, %c0_43] : memref<16x32xf32, #tpu.memory_space<vmem>>, vector<16x32xf32>
    tpu.vector_store %arg8[%c0_42, %c0_43], %96 {strides = array<i32>} : memref<16x32xf32, #tpu.memory_space<vmem>>, vector<16x32xf32>,
    %c0_44 = arith.constant 0 : index
    %c0_45 = arith.constant 0 : index
    %98 = vector.load %arg9[%c0_44, %c0_45] : memref<16x32xf32, #tpu.memory_space<vmem>>, vector<16x32xf32>
    tpu.vector_store %arg9[%c0_44, %c0_45], %69 {strides = array<i32>} : memref<16x32xf32, #tpu.memory_space<vmem>>, vector<16x32xf32>,
    return
  }
  func.func @transform_0(%arg0: i32) -> (i32, i32) {
    %c0_i32 = arith.constant 0 : i32
    %c0_i32_0 = arith.constant 0 : i32
    return %arg0, %c0_i32 : i32, i32
  }
  func.func @transform_1(%arg0: i32) -> (i32, i32) {
    %c0_i32 = arith.constant 0 : i32
    %c0_i32_0 = arith.constant 0 : i32
    return %arg0, %c0_i32 : i32, i32
  }
  func.func @transform_2(%arg0: i32) -> (i32, i32) {
    %c0_i32 = arith.constant 0 : i32
    %c0_i32_0 = arith.constant 0 : i32
    %c0_i32_1 = arith.constant 0 : i32
    return %c0_i32, %c0_i32_0 : i32, i32
  }
  func.func @transform_3(%arg0: i32) -> (i32, i32) {
    %c0_i32 = arith.constant 0 : i32
    %c0_i32_0 = arith.constant 0 : i32
    %c0_i32_1 = arith.constant 0 : i32
    return %c0_i32, %c0_i32_0 : i32, i32
  }
  func.func @transform_4(%arg0: i32) -> (i32, i32) {
    %c0_i32 = arith.constant 0 : i32
    %c0_i32_0 = arith.constant 0 : i32
    %c0_i32_1 = arith.constant 0 : i32
    return %c0_i32, %c0_i32_0 : i32, i32
  }
  func.func @transform_5(%arg0: i32) -> (i32, i32) {
    %c0_i32 = arith.constant 0 : i32
    %c0_i32_0 = arith.constant 0 : i32
    %c0_i32_1 = arith.constant 0 : i32
    return %c0_i32, %c0_i32_0 : i32, i32
  }
  func.func @transform_6(%arg0: i32) -> (i32, i32) {
    %c0_i32 = arith.constant 0 : i32
    %c0_i32_0 = arith.constant 0 : i32
    %c0_i32_1 = arith.constant 0 : i32
    return %c0_i32, %c0_i32_0 : i32, i32
  }
  func.func @transform_7(%arg0: i32) -> (i32, i32) {
    %c0_i32 = arith.constant 0 : i32
    %c0_i32_0 = arith.constant 0 : i32
    return %arg0, %c0_i32 : i32, i32
  }
  func.func @transform_8(%arg0: i32) -> (i32, i32) {
    %c0_i32 = arith.constant 0 : i32
    %c0_i32_0 = arith.constant 0 : i32
    return %arg0, %c0_i32 : i32, i32
  }
}

</mosaic_0001>

<llo_original>
// kernel: tpu_custom_call.1
$region0: #{tpu_custom_call.1}
  #allocation0 [shape = 'u32[]', space=smem, size = 0x4, offset = 0x4, fixed_abs, tag = 'smem constant byte address 0x4 - core index']
  #allocation1 [shape = 'u32[144,128]{1,0:T(1,128)}', space=vmem, size = 0x12000, scoped, tag = 'internal scratch']
  %s0 = inlined_call_operand.hbm [shape: f32[16,32], index: 0, kind: input, shape index: {}]
  %s1 = inlined_call_operand.hbm [shape: f32[16,32], index: 1, kind: input, shape index: {}]
  %s2 = inlined_call_operand.hbm [shape: f32[8,8], index: 2, kind: input, shape index: {}]
  %s3 = inlined_call_operand.hbm [shape: f32[8,8], index: 3, kind: input, shape index: {}]
  %s4 = inlined_call_operand.hbm [shape: f32[8,8], index: 4, kind: input, shape index: {}]
  %s5 = inlined_call_operand.hbm [shape: f32[32,32], index: 5, kind: input, shape index: {}]
  %s6 = inlined_call_operand.hbm [shape: f32[32,32], index: 6, kind: input, shape index: {}]
  %s7 = inlined_call_operand.hbm [shape: f32[16,32], index: 7, kind: output, shape index: {0}]
  %s8 = inlined_call_operand.hbm [shape: f32[16,32], index: 8, kind: output, shape index: {1}]
  %9 = xla_tuple %s7, %s8
  %s10 = sld [smem:[#allocation0]]
  $region74: #{tpu_custom_call.1} parent=0
    _
  %s12 = ssub.s32 1, %s10
  %s13 = scalar_select 0, %s12, %s10
  $region1: #{tpu_custom_call.1} parent=0
    #allocation2 [shape = 'u8[8192]{0}', space=vmem, size = 0x2000, scoped, tag = 'input window, operand 0, single buffered']
    #allocation3 [shape = 's32[1]{0}', space=sflag, size = 0x4, scoped, tag = 'scoped memory for tpu_custom_call.1']
    #allocation4 [shape = 's32[1]{0}', space=sflag, size = 0x4, scoped, tag = 'scoped memory for tpu_custom_call.1']
    #allocation5 [shape = 'u8[8192]{0}', space=vmem, size = 0x2000, scoped, tag = 'input window, operand 1, single buffered']
    #allocation6 [shape = 's32[1]{0}', space=sflag, size = 0x4, scoped, tag = 'scoped memory for tpu_custom_call.1']
    #allocation7 [shape = 'u8[4096]{0}', space=vmem, size = 0x1000, scoped, tag = 'input window, operand 2, single buffered']
    #allocation8 [shape = 'u8[4096]{0}', space=vmem, size = 0x1000, scoped, tag = 'input window, operand 3, single buffered']
    #allocation9 [shape = 's32[1]{0}', space=sflag, size = 0x4, scoped, tag = 'scoped memory for tpu_custom_call.1']
    #allocation10 [shape = 'u8[4096]{0}', space=vmem, size = 0x1000, scoped, tag = 'input window, operand 4, single buffered']
    #allocation11 [shape = 'u8[16384]{0}', space=vmem, size = 0x4000, scoped, tag = 'input window, operand 5, single buffered']
    #allocation12 [shape = 's32[1]{0}', space=sflag, size = 0x4, scoped, tag = 'scoped memory for tpu_custom_call.1']
    #allocation13 [shape = 'u8[16384]{0}', space=vmem, size = 0x4000, scoped, tag = 'input window, operand 6, single buffered']
    #allocation14 [shape = 'u8[8192]{0}', space=vmem, size = 0x2000, scoped, tag = 'output window, operand 0, single buffered']
    #allocation15 [shape = 'u8[8192]{0}', space=vmem, size = 0x2000, scoped, tag = 'output window, operand 1, single buffered']
    #allocation16 [shape = 's32[1]{0}', space=sflag, size = 0x4, scoped, tag = 'scoped memory for tpu_custom_call.1']
    %14 = vsyncpa [#allocation3], 0
    %15 = vsyncpa [#allocation6], 0
    %16 = vsyncpa [#allocation9], 0
    %17 = vsyncpa [#allocation12], 0
    %18 = vsyncpa [#allocation4], 0
    %19 = vsyncpa [#allocation16], 0
    // Predicated region
    $region2: #{tpu_custom_call.1} parent=1 // pred_check
      _
    $region3: #{tpu_custom_call.1} parent=1 // pred_check_branch
      %21 = sbr.rel (0) target = $region5
    $region4: #{tpu_custom_call.1} parent=1 // pred_region
      %s23 = ssub.s32 256, 256
      %24 = vsyncadd [#allocation3], %s23
      %s25 = sshll.u32 [#allocation2], 4
      %s26 = int_to_ptr.vmem [resolvable:$true] %s25
      %31 = dma.hbm_to_vmem [thread:$0]  %s0, 256, %s26, [#allocation3], 128, 128, 8
    $region5: #{tpu_custom_call.1} parent=1 // pred_fallthru
      _
    // Predicated region
    $region6: #{tpu_custom_call.1} parent=1 // pred_check
      _
    $region7: #{tpu_custom_call.1} parent=1 // pred_check_branch
      %33 = sbr.rel (0) target = $region9
    $region8: #{tpu_custom_call.1} parent=1 // pred_region
      %s35 = ssub.s32 256, 256
      %36 = vsyncadd [#allocation6], %s35
      %s37 = sshll.u32 [#allocation5], 4
      %s38 = int_to_ptr.vmem [resolvable:$true] %s37
      %43 = dma.hbm_to_vmem [thread:$0]  %s1, 256, %s38, [#allocation6], 128, 128, 8
    $region9: #{tpu_custom_call.1} parent=1 // pred_fallthru
      _
    // Predicated region
    $region10: #{tpu_custom_call.1} parent=1 // pred_check
      _
    $region11: #{tpu_custom_call.1} parent=1 // pred_check_branch
      %45 = sbr.rel (0) target = $region13
    $region12: #{tpu_custom_call.1} parent=1 // pred_region
      %s47 = ssub.s32 128, 128
      %48 = vsyncadd [#allocation6], %s47
      %s50 = sshll.u32 [#allocation7], 4
      %s51 = int_to_ptr.vmem [resolvable:$true] %s50
      %53 = dma.hbm_to_vmem [thread:$0]  %s2, 128, %s51, [#allocation6]
    $region13: #{tpu_custom_call.1} parent=1 // pred_fallthru
      _
    // Predicated region
    $region14: #{tpu_custom_call.1} parent=1 // pred_check
      _
    $region15: #{tpu_custom_call.1} parent=1 // pred_check_branch
      %55 = sbr.rel (0) target = $region17
    $region16: #{tpu_custom_call.1} parent=1 // pred_region
      %s57 = ssub.s32 128, 128
      %58 = vsyncadd [#allocation9], %s57
      %s60 = sshll.u32 [#allocation8], 4
      %s61 = int_to_ptr.vmem [resolvable:$true] %s60
      %63 = dma.hbm_to_vmem [thread:$0]  %s3, 128, %s61, [#allocation9]
    $region17: #{tpu_custom_call.1} parent=1 // pred_fallthru
      _
    // Predicated region
    $region18: #{tpu_custom_call.1} parent=1 // pred_check
      _
    $region19: #{tpu_custom_call.1} parent=1 // pred_check_branch
      %65 = sbr.rel (0) target = $region21
    $region20: #{tpu_custom_call.1} parent=1 // pred_region
      %s67 = ssub.s32 128, 128
      %68 = vsyncadd [#allocation9], %s67
      %s70 = sshll.u32 [#allocation10], 4
      %s71 = int_to_ptr.vmem [resolvable:$true] %s70
      %73 = dma.hbm_to_vmem [thread:$0]  %s4, 128, %s71, [#allocation9]
    $region21: #{tpu_custom_call.1} parent=1 // pred_fallthru
      _
    // Predicated region
    $region22: #{tpu_custom_call.1} parent=1 // pred_check
      _
    $region23: #{tpu_custom_call.1} parent=1 // pred_check_branch
      %75 = sbr.rel (0) target = $region25
    $region24: #{tpu_custom_call.1} parent=1 // pred_region
      %s77 = ssub.s32 512, 512
      %78 = vsyncadd [#allocation12], %s77
      %s79 = sshll.u32 [#allocation11], 4
      %s80 = int_to_ptr.vmem [resolvable:$true] %s79
      %85 = dma.hbm_to_vmem [thread:$0]  %s5, 512, %s80, [#allocation12], 128, 128, 8
    $region25: #{tpu_custom_call.1} parent=1 // pred_fallthru
      _
    // Predicated region
    $region26: #{tpu_custom_call.1} parent=1 // pred_check
      _
    $region27: #{tpu_custom_call.1} parent=1 // pred_check_branch
      %87 = sbr.rel (0) target = $region29
    $region28: #{tpu_custom_call.1} parent=1 // pred_region
      %s89 = ssub.s32 512, 512
      %90 = vsyncadd [#allocation12], %s89
      %s91 = sshll.u32 [#allocation13], 4
      %s92 = int_to_ptr.vmem [resolvable:$true] %s91
      %97 = dma.hbm_to_vmem [thread:$0]  %s6, 512, %s92, [#allocation12], 128, 128, 8
    $region29: #{tpu_custom_call.1} parent=1 // pred_fallthru
      _
    // Predicated region
    $region30: #{tpu_custom_call.1} parent=1 // pred_check
      _
    $region31: #{tpu_custom_call.1} parent=1 // pred_check_branch
      %99 = sbr.rel (0) target = $region33
    $region32: #{tpu_custom_call.1} parent=1 // pred_region
      %100 = dma.done [#allocation3], 256
    $region33: #{tpu_custom_call.1} parent=1 // pred_fallthru
      _
    // Predicated region
    $region34: #{tpu_custom_call.1} parent=1 // pred_check
      _
    $region35: #{tpu_custom_call.1} parent=1 // pred_check_branch
      %102 = sbr.rel (0) target = $region37
    $region36: #{tpu_custom_call.1} parent=1 // pred_region
      %103 = dma.done [#allocation6], 256
    $region37: #{tpu_custom_call.1} parent=1 // pred_fallthru
      _
    // Predicated region
    $region38: #{tpu_custom_call.1} parent=1 // pred_check
      _
    $region39: #{tpu_custom_call.1} parent=1 // pred_check_branch
      %105 = sbr.rel (0) target = $region41
    $region40: #{tpu_custom_call.1} parent=1 // pred_region
      %106 = dma.done [#allocation6], 128
    $region41: #{tpu_custom_call.1} parent=1 // pred_fallthru
      _
    // Predicated region
    $region42: #{tpu_custom_call.1} parent=1 // pred_check
      _
    $region43: #{tpu_custom_call.1} parent=1 // pred_check_branch
      %108 = sbr.rel (0) target = $region45
    $region44: #{tpu_custom_call.1} parent=1 // pred_region
      %109 = dma.done [#allocation9], 128
    $region45: #{tpu_custom_call.1} parent=1 // pred_fallthru
      _
    // Predicated region
    $region46: #{tpu_custom_call.1} parent=1 // pred_check
      _
    $region47: #{tpu_custom_call.1} parent=1 // pred_check_branch
      %111 = sbr.rel (0) target = $region49
    $region48: #{tpu_custom_call.1} parent=1 // pred_region
      %112 = dma.done [#allocation9], 128
    $region49: #{tpu_custom_call.1} parent=1 // pred_fallthru
      _
    // Predicated region
    $region50: #{tpu_custom_call.1} parent=1 // pred_check
      _
    $region51: #{tpu_custom_call.1} parent=1 // pred_check_branch
      %114 = sbr.rel (0) target = $region53
    $region52: #{tpu_custom_call.1} parent=1 // pred_region
      %115 = dma.done [#allocation12], 512
    $region53: #{tpu_custom_call.1} parent=1 // pred_fallthru
      _
    // Predicated region
    $region54: #{tpu_custom_call.1} parent=1 // pred_check
      _
    $region55: #{tpu_custom_call.1} parent=1 // pred_check_branch
      %117 = sbr.rel (0) target = $region57
    $region56: #{tpu_custom_call.1} parent=1 // pred_region
      %118 = dma.done [#allocation12], 512
    $region57: #{tpu_custom_call.1} parent=1 // pred_fallthru
      _
    %v119 = vld [vmem:[#allocation2] sm:$0xff]
    %v120 = vld [vmem:[#allocation2 + $0x8] sm:$0xff]
    %v121 = vld [vmem:[#allocation5] sm:$0xff]
    %v122 = vld [vmem:[#allocation5 + $0x8] sm:$0xff]
    %v123 = vld [vmem:[#allocation7] sm:$0xff]
    %v124 = vld [vmem:[#allocation8] sm:$0xff]
    %v125 = vld [vmem:[#allocation10] sm:$0xff]
    %v126 = vld [vmem:[#allocation11] sm:$0xff]
    %v127 = vld [vmem:[#allocation11 + $0x8] sm:$0xff]
    %v128 = vld [vmem:[#allocation11 + $0x10] sm:$0xff]
    %v129 = vld [vmem:[#allocation11 + $0x18] sm:$0xff]
    %v130 = vld [vmem:[#allocation13] sm:$0xff]
    %v131 = vld [vmem:[#allocation13 + $0x8] sm:$0xff]
    %v132 = vld [vmem:[#allocation13 + $0x10] sm:$0xff]
    %v133 = vld [vmem:[#allocation13 + $0x18] sm:$0xff]
    %vm134 = vcmask 261120
    %v135 = vsel %vm134, %v119, 0.0
    %136 = vadd.xlane.f32.xlu0 %v135
    %v137 = vpop.xlane.xlu0 %136
    %v138 = vsel %vm134, %v120, 0.0
    %139 = vadd.xlane.f32.xlu0 %v138
    %v140 = vpop.xlane.xlu0 %139
    %v141 = vrcp.pop 32.0
    %v142 = vmul.f32 %v137, %v141
    %v143 = vmul.f32 %v140, %v141
    %v144 = vsub.f32 %v119, %v142
    %v145 = vsub.f32 %v120, %v143
    %v146 = vmul.f32 %v144, %v144
    %v147 = vmul.f32 %v145, %v145
    %v148 = vsel %vm134, %v146, 0.0
    %149 = vadd.xlane.f32.xlu0 %v148
    %v150 = vpop.xlane.xlu0 %149
    %v151 = vsel %vm134, %v147, 0.0
    %152 = vadd.xlane.f32.xlu0 %v151
    %v153 = vpop.xlane.xlu0 %152
    %v154 = vrcp.pop 31.0
    %v155 = vmul.f32 %v150, %v154
    %v156 = vmul.f32 %v153, %v154
    %v157 = vadd.f32 %v155, 0.001
    %v158 = vadd.f32 %v156, 0.001
    %v159 = vrsqrt.pop %v157
    %v160 = vrsqrt.pop %v158
    %v161 = vmul.f32 %v119, %v159
    %v162 = vmul.f32 %v120, %v160
    %164 = vrot.lane.b32.xlu0 %v162, 32
    %v165 = vpop.permute.xlu0 %164
    %v167 = vsel %vm134, %v161, %v165
    %vm168 = vcmask 64512
    %v170 = vsel %vm168, %v123, 0
    %172 = vmatprep.subr.mxu0 0.0
    %173 = vmatpush1.msra.mxu0 0.0
    %174 = vmatprep.subr.mxu0 0.0
    %175 = vmatpush1.msra.mxu0 0.0
    %176 = vmatprep.subr.mxu0 0.0
    %177 = vmatpush1.msra.mxu0 0.0
    %178 = vmatprep.subr.mxu0 0.0
    %179 = vmatpush1.msra.mxu0 0.0
    %180 = vmatprep.subr.mxu0 0.0
    %181 = vmatpush1.msra.mxu0 0.0
    %182 = vmatprep.subr.mxu0 0.0
    %183 = vmatpush1.msra.mxu0 0.0
    %184 = vmatprep.subr.mxu0 0.0
    %185 = vmatpush1.msra.mxu0 0.0
    %186 = vmatprep.subr.mxu0 0.0
    %187 = vmatpush1.msra.mxu0 0.0
    %188 = vmatprep.subr.mxu0 0.0
    %189 = vmatpush1.msra.mxu0 0.0
    %190 = vmatprep.subr.mxu0 0.0
    %191 = vmatpush1.msra.mxu0 0.0
    %192 = vmatprep.subr.mxu0 0.0
    %193 = vmatpush1.msra.mxu0 0.0
    %194 = vmatprep.subr.mxu0 0.0
    %195 = vmatpush1.msra.mxu0 0.0
    %196 = vmatprep.subr.mxu0 0.0
    %197 = vmatpush1.msra.mxu0 0.0
    %198 = vmatprep.subr.mxu0 0.0
    %199 = vmatpush1.msra.mxu0 0.0
    %200 = vmatprep.subr.mxu0 0.0
    %201 = vmatpush1.msra.mxu0 0.0
    %202 = vmatprep.subr.mxu0 0.0
    %203 = vmatpush1.msra.mxu0 %v167
    %204 = vmatprep.subr.mxu0 0.0
    %205 = vmatpush2.msra.mxu0 0.0
    %206 = vmatprep.subr.mxu0 0.0
    %207 = vmatpush2.msra.mxu0 0.0
    %208 = vmatprep.subr.mxu0 0.0
    %209 = vmatpush2.msra.mxu0 0.0
    %210 = vmatprep.subr.mxu0 0.0
    %211 = vmatpush2.msra.mxu0 0.0
    %212 = vmatprep.subr.mxu0 0.0
    %213 = vmatpush2.msra.mxu0 0.0
    %214 = vmatprep.subr.mxu0 0.0
    %215 = vmatpush2.msra.mxu0 0.0
    %216 = vmatprep.subr.mxu0 0.0
    %217 = vmatpush2.msra.mxu0 0.0
    %218 = vmatprep.subr.mxu0 0.0
    %219 = vmatpush2.msra.mxu0 0.0
    %220 = vmatprep.subr.mxu0 0.0
    %221 = vmatpush2.msra.mxu0 0.0
    %222 = vmatprep.subr.mxu0 0.0
    %223 = vmatpush2.msra.mxu0 0.0
    %224 = vmatprep.subr.mxu0 0.0
    %225 = vmatpush2.msra.mxu0 0.0
    %226 = vmatprep.subr.mxu0 0.0
    %227 = vmatpush2.msra.mxu0 0.0
    %228 = vmatprep.subr.mxu0 0.0
    %229 = vmatpush2.msra.mxu0 0.0
    %230 = vmatprep.subr.mxu0 0.0
    %231 = vmatpush2.msra.mxu0 0.0
    %232 = vmatprep.subr.mxu0 0.0
    %233 = vmatpush2.msra.mxu0 0.0
    %234 = vmatprep.subr.mxu0 0.0
    %235 = vmatpush2.msra.mxu0 0.0
    %236 = vmatprep.mubr.f32.mxu0 0.0
    %237 = vmatmul.mubr.f32.gmra.mxu0 %v170
    %v238 = vpop.f32.mrf.mxu0
    %v239 = vadd.f32 0.0, %v238
    %v240 = vpop.f32.mrf.mxu0
    %241 = vdwg.mxu0
    %v243 = vsel %vm168, %v124, 0
    %245 = vmatprep.subr.mxu0 0.0
    %246 = vmatpush1.msra.mxu0 0.0
    %247 = vmatprep.subr.mxu0 0.0
    %248 = vmatpush1.msra.mxu0 0.0
    %249 = vmatprep.subr.mxu0 0.0
    %250 = vmatpush1.msra.mxu0 0.0
    %251 = vmatprep.subr.mxu0 0.0
    %252 = vmatpush1.msra.mxu0 0.0
    %253 = vmatprep.subr.mxu0 0.0
    %254 = vmatpush1.msra.mxu0 0.0
    %255 = vmatprep.subr.mxu0 0.0
    %256 = vmatpush1.msra.mxu0 0.0
    %257 = vmatprep.subr.mxu0 0.0
    %258 = vmatpush1.msra.mxu0 0.0
    %259 = vmatprep.subr.mxu0 0.0
    %260 = vmatpush1.msra.mxu0 0.0
    %261 = vmatprep.subr.mxu0 0.0
    %262 = vmatpush1.msra.mxu0 0.0
    %263 = vmatprep.subr.mxu0 0.0
    %264 = vmatpush1.msra.mxu0 0.0
    %265 = vmatprep.subr.mxu0 0.0
    %266 = vmatpush1.msra.mxu0 0.0
    %267 = vmatprep.subr.mxu0 0.0
    %268 = vmatpush1.msra.mxu0 0.0
    %269 = vmatprep.subr.mxu0 0.0
    %270 = vmatpush1.msra.mxu0 0.0
    %271 = vmatprep.subr.mxu0 0.0
    %272 = vmatpush1.msra.mxu0 0.0
    %273 = vmatprep.subr.mxu0 0.0
    %274 = vmatpush1.msra.mxu0 0.0
    %275 = vmatprep.subr.mxu0 0.0
    %276 = vmatpush1.msra.mxu0 %v167
    %277 = vmatprep.subr.mxu0 0.0
    %278 = vmatpush2.msra.mxu0 0.0
    %279 = vmatprep.subr.mxu0 0.0
    %280 = vmatpush2.msra.mxu0 0.0
    %281 = vmatprep.subr.mxu0 0.0
    %282 = vmatpush2.msra.mxu0 0.0
    %283 = vmatprep.subr.mxu0 0.0
    %284 = vmatpush2.msra.mxu0 0.0
    %285 = vmatprep.subr.mxu0 0.0
    %286 = vmatpush2.msra.mxu0 0.0
    %287 = vmatprep.subr.mxu0 0.0
    %288 = vmatpush2.msra.mxu0 0.0
    %289 = vmatprep.subr.mxu0 0.0
    %290 = vmatpush2.msra.mxu0 0.0
    %291 = vmatprep.subr.mxu0 0.0
    %292 = vmatpush2.msra.mxu0 0.0
    %293 = vmatprep.subr.mxu0 0.0
    %294 = vmatpush2.msra.mxu0 0.0
    %295 = vmatprep.subr.mxu0 0.0
    %296 = vmatpush2.msra.mxu0 0.0
    %297 = vmatprep.subr.mxu0 0.0
    %298 = vmatpush2.msra.mxu0 0.0
    %299 = vmatprep.subr.mxu0 0.0
    %300 = vmatpush2.msra.mxu0 0.0
    %301 = vmatprep.subr.mxu0 0.0
    %302 = vmatpush2.msra.mxu0 0.0
    %303 = vmatprep.subr.mxu0 0.0
    %304 = vmatpush2.msra.mxu0 0.0
    %305 = vmatprep.subr.mxu0 0.0
    %306 = vmatpush2.msra.mxu0 0.0
    %307 = vmatprep.subr.mxu0 0.0
    %308 = vmatpush2.msra.mxu0 0.0
    %309 = vmatprep.mubr.f32.mxu0 0.0
    %310 = vmatmul.mubr.f32.gmra.mxu0 %v243
    %v311 = vpop.f32.mrf.mxu0
    %v312 = vadd.f32 0.0, %v311
    %v313 = vpop.f32.mrf.mxu0
    %314 = vdwg.mxu0
    %v316 = vsel %vm168, %v125, 0
    %318 = vmatprep.subr.mxu0 0.0
    %319 = vmatpush1.msra.mxu0 0.0
    %320 = vmatprep.subr.mxu0 0.0
    %321 = vmatpush1.msra.mxu0 0.0
    %322 = vmatprep.subr.mxu0 0.0
    %323 = vmatpush1.msra.mxu0 0.0
    %324 = vmatprep.subr.mxu0 0.0
    %325 = vmatpush1.msra.mxu0 0.0
    %326 = vmatprep.subr.mxu0 0.0
    %327 = vmatpush1.msra.mxu0 0.0
    %328 = vmatprep.subr.mxu0 0.0
    %329 = vmatpush1.msra.mxu0 0.0
    %330 = vmatprep.subr.mxu0 0.0
    %331 = vmatpush1.msra.mxu0 0.0
    %332 = vmatprep.subr.mxu0 0.0
    %333 = vmatpush1.msra.mxu0 0.0
    %334 = vmatprep.subr.mxu0 0.0
    %335 = vmatpush1.msra.mxu0 0.0
    %336 = vmatprep.subr.mxu0 0.0
    %337 = vmatpush1.msra.mxu0 0.0
    %338 = vmatprep.subr.mxu0 0.0
    %339 = vmatpush1.msra.mxu0 0.0
    %340 = vmatprep.subr.mxu0 0.0
    %341 = vmatpush1.msra.mxu0 0.0
    %342 = vmatprep.subr.mxu0 0.0
    %343 = vmatpush1.msra.mxu0 0.0
    %344 = vmatprep.subr.mxu0 0.0
    %345 = vmatpush1.msra.mxu0 0.0
    %346 = vmatprep.subr.mxu0 0.0
    %347 = vmatpush1.msra.mxu0 0.0
    %348 = vmatprep.subr.mxu0 0.0
    %349 = vmatpush1.msra.mxu0 %v167
    %350 = vmatprep.subr.mxu0 0.0
    %351 = vmatpush2.msra.mxu0 0.0
    %352 = vmatprep.subr.mxu0 0.0
    %353 = vmatpush2.msra.mxu0 0.0
    %354 = vmatprep.subr.mxu0 0.0
    %355 = vmatpush2.msra.mxu0 0.0
    %356 = vmatprep.subr.mxu0 0.0
    %357 = vmatpush2.msra.mxu0 0.0
    %358 = vmatprep.subr.mxu0 0.0
    %359 = vmatpush2.msra.mxu0 0.0
    %360 = vmatprep.subr.mxu0 0.0
    %361 = vmatpush2.msra.mxu0 0.0
    %362 = vmatprep.subr.mxu0 0.0
    %363 = vmatpush2.msra.mxu0 0.0
    %364 = vmatprep.subr.mxu0 0.0
    %365 = vmatpush2.msra.mxu0 0.0
    %366 = vmatprep.subr.mxu0 0.0
    %367 = vmatpush2.msra.mxu0 0.0
    %368 = vmatprep.subr.mxu0 0.0
    %369 = vmatpush2.msra.mxu0 0.0
    %370 = vmatprep.subr.mxu0 0.0
    %371 = vmatpush2.msra.mxu0 0.0
    %372 = vmatprep.subr.mxu0 0.0
    %373 = vmatpush2.msra.mxu0 0.0
    %374 = vmatprep.subr.mxu0 0.0
    %375 = vmatpush2.msra.mxu0 0.0
    %376 = vmatprep.subr.mxu0 0.0
    %377 = vmatpush2.msra.mxu0 0.0
    %378 = vmatprep.subr.mxu0 0.0
    %379 = vmatpush2.msra.mxu0 0.0
    %380 = vmatprep.subr.mxu0 0.0
    %381 = vmatpush2.msra.mxu0 0.0
    %382 = vmatprep.mubr.f32.mxu0 0.0
    %383 = vmatmul.mubr.f32.gmra.mxu0 %v316
    %v384 = vpop.f32.mrf.mxu0
    %v385 = vadd.f32 0.0, %v384
    %v386 = vpop.f32.mrf.mxu0
    %387 = vdwg.mxu0
    %v389 = vsel %vm134, %v239, 0
    %v392 = vsel %vm134, %v312, 0
    %394 = vmatprep.subr.mxu0 0.0
    %395 = vmatpush1.xpose.msra.mxu0 0.0
    %396 = vmatprep.subr.mxu0 0.0
    %397 = vmatpush1.xpose.msra.mxu0 0.0
    %398 = vmatprep.subr.mxu0 0.0
    %399 = vmatpush1.xpose.msra.mxu0 0.0
    %400 = vmatprep.subr.mxu0 0.0
    %401 = vmatpush1.xpose.msra.mxu0 0.0
    %402 = vmatprep.subr.mxu0 0.0
    %403 = vmatpush1.xpose.msra.mxu0 0.0
    %404 = vmatprep.subr.mxu0 0.0
    %405 = vmatpush1.xpose.msra.mxu0 0.0
    %406 = vmatprep.subr.mxu0 0.0
    %407 = vmatpush1.xpose.msra.mxu0 0.0
    %408 = vmatprep.subr.mxu0 0.0
    %409 = vmatpush1.xpose.msra.mxu0 0.0
    %410 = vmatprep.subr.mxu0 0.0
    %411 = vmatpush1.xpose.msra.mxu0 0.0
    %412 = vmatprep.subr.mxu0 0.0
    %413 = vmatpush1.xpose.msra.mxu0 0.0
    %414 = vmatprep.subr.mxu0 0.0
    %415 = vmatpush1.xpose.msra.mxu0 0.0
    %416 = vmatprep.subr.mxu0 0.0
    %417 = vmatpush1.xpose.msra.mxu0 0.0
    %418 = vmatprep.subr.mxu0 0.0
    %419 = vmatpush1.xpose.msra.mxu0 0.0
    %420 = vmatprep.subr.mxu0 0.0
    %421 = vmatpush1.xpose.msra.mxu0 0.0
    %422 = vmatprep.subr.mxu0 0.0
    %423 = vmatpush1.xpose.msra.mxu0 0.0
    %424 = vmatprep.subr.mxu0 0.0
    %425 = vmatpush1.xpose.msra.mxu0 %v392
    %426 = vmatprep.subr.mxu0 0.0
    %427 = vmatpush2.xpose.msra.mxu0 0.0
    %428 = vmatprep.subr.mxu0 0.0
    %429 = vmatpush2.xpose.msra.mxu0 0.0
    %430 = vmatprep.subr.mxu0 0.0
    %431 = vmatpush2.xpose.msra.mxu0 0.0
    %432 = vmatprep.subr.mxu0 0.0
    %433 = vmatpush2.xpose.msra.mxu0 0.0
    %434 = vmatprep.subr.mxu0 0.0
    %435 = vmatpush2.xpose.msra.mxu0 0.0
    %436 = vmatprep.subr.mxu0 0.0
    %437 = vmatpush2.xpose.msra.mxu0 0.0
    %438 = vmatprep.subr.mxu0 0.0
    %439 = vmatpush2.xpose.msra.mxu0 0.0
    %440 = vmatprep.subr.mxu0 0.0
    %441 = vmatpush2.xpose.msra.mxu0 0.0
    %442 = vmatprep.subr.mxu0 0.0
    %443 = vmatpush2.xpose.msra.mxu0 0.0
    %444 = vmatprep.subr.mxu0 0.0
    %445 = vmatpush2.xpose.msra.mxu0 0.0
    %446 = vmatprep.subr.mxu0 0.0
    %447 = vmatpush2.xpose.msra.mxu0 0.0
    %448 = vmatprep.subr.mxu0 0.0
    %449 = vmatpush2.xpose.msra.mxu0 0.0
    %450 = vmatprep.subr.mxu0 0.0
    %451 = vmatpush2.xpose.msra.mxu0 0.0
    %452 = vmatprep.subr.mxu0 0.0
    %453 = vmatpush2.xpose.msra.mxu0 0.0
    %454 = vmatprep.subr.mxu0 0.0
    %455 = vmatpush2.xpose.msra.mxu0 0.0
    %456 = vmatprep.subr.mxu0 0.0
    %457 = vmatpush2.xpose.msra.mxu0 0.0
    %458 = vmatprep.mubr.f32.mxu0 0.0
    %459 = vmatmul.mubr.f32.gmra.mxu0 %v389
    %v460 = vpop.f32.mrf.mxu0
    %v461 = vadd.f32 0.0, %v460
    %v462 = vpop.f32.mrf.mxu0
    %463 = vdwg.mxu0
    %v464 = vmul.f32 %v461, 0.35355338
    %v465 = vsel %vm168, %v464, -inf
    %v466 = vrot.slane %v465, 4
    %v467 = vmax.f32 %v465, %v466
    %v468 = vrot.slane %v467, 2
    %v469 = vmax.f32 %v467, %v468
    %v470 = vrot.slane %v469, 1
    %v471 = vmax.f32 %v469, %v470
    %v472 = vsub.f32 %v464, %v471
    %v473 = vmul.f32 %v472, 1.442695
    %v474 = vpow.pop %v473
    %v475 = vsel %vm168, %v474, 0.0
    %v476 = vrot.slane %v475, 4
    %v477 = vadd.f32 %v475, %v476
    %v478 = vrot.slane %v477, 2
    %v479 = vadd.f32 %v477, %v478
    %v480 = vrot.slane %v479, 1
    %v481 = vadd.f32 %v479, %v480
    %v482 = vrcp.pop %v481
    %v483 = vmul.f32 %v474, %v482
    %v485 = vsel %vm168, %v483, 0
    %487 = vmatprep.subr.mxu0 0.0
    %488 = vmatpush1.msra.mxu0 0.0
    %489 = vmatprep.subr.mxu0 0.0
    %490 = vmatpush1.msra.mxu0 0.0
    %491 = vmatprep.subr.mxu0 0.0
    %492 = vmatpush1.msra.mxu0 0.0
    %493 = vmatprep.subr.mxu0 0.0
    %494 = vmatpush1.msra.mxu0 0.0
    %495 = vmatprep.subr.mxu0 0.0
    %496 = vmatpush1.msra.mxu0 0.0
    %497 = vmatprep.subr.mxu0 0.0
    %498 = vmatpush1.msra.mxu0 0.0
    %499 = vmatprep.subr.mxu0 0.0
    %500 = vmatpush1.msra.mxu0 0.0
    %501 = vmatprep.subr.mxu0 0.0
    %502 = vmatpush1.msra.mxu0 0.0
    %503 = vmatprep.subr.mxu0 0.0
    %504 = vmatpush1.msra.mxu0 0.0
    %505 = vmatprep.subr.mxu0 0.0
    %506 = vmatpush1.msra.mxu0 0.0
    %507 = vmatprep.subr.mxu0 0.0
    %508 = vmatpush1.msra.mxu0 0.0
    %509 = vmatprep.subr.mxu0 0.0
    %510 = vmatpush1.msra.mxu0 0.0
    %511 = vmatprep.subr.mxu0 0.0
    %512 = vmatpush1.msra.mxu0 0.0
    %513 = vmatprep.subr.mxu0 0.0
    %514 = vmatpush1.msra.mxu0 0.0
    %515 = vmatprep.subr.mxu0 0.0
    %516 = vmatpush1.msra.mxu0 0.0
    %517 = vmatprep.subr.mxu0 0.0
    %518 = vmatpush1.msra.mxu0 %v385
    %519 = vmatprep.subr.mxu0 0.0
    %520 = vmatpush2.msra.mxu0 0.0
    %521 = vmatprep.subr.mxu0 0.0
    %522 = vmatpush2.msra.mxu0 0.0
    %523 = vmatprep.subr.mxu0 0.0
    %524 = vmatpush2.msra.mxu0 0.0
    %525 = vmatprep.subr.mxu0 0.0
    %526 = vmatpush2.msra.mxu0 0.0
    %527 = vmatprep.subr.mxu0 0.0
    %528 = vmatpush2.msra.mxu0 0.0
    %529 = vmatprep.subr.mxu0 0.0
    %530 = vmatpush2.msra.mxu0 0.0
    %531 = vmatprep.subr.mxu0 0.0
    %532 = vmatpush2.msra.mxu0 0.0
    %533 = vmatprep.subr.mxu0 0.0
    %534 = vmatpush2.msra.mxu0 0.0
    %535 = vmatprep.subr.mxu0 0.0
    %536 = vmatpush2.msra.mxu0 0.0
    %537 = vmatprep.subr.mxu0 0.0
    %538 = vmatpush2.msra.mxu0 0.0
    %539 = vmatprep.subr.mxu0 0.0
    %540 = vmatpush2.msra.mxu0 0.0
    %541 = vmatprep.subr.mxu0 0.0
    %542 = vmatpush2.msra.mxu0 0.0
    %543 = vmatprep.subr.mxu0 0.0
    %544 = vmatpush2.msra.mxu0 0.0
    %545 = vmatprep.subr.mxu0 0.0
    %546 = vmatpush2.msra.mxu0 0.0
    %547 = vmatprep.subr.mxu0 0.0
    %548 = vmatpush2.msra.mxu0 0.0
    %549 = vmatprep.subr.mxu0 0.0
    %550 = vmatpush2.msra.mxu0 0.0
    %551 = vmatprep.mubr.f32.mxu0 0.0
    %552 = vmatmul.mubr.f32.gmra.mxu0 %v485
    %v553 = vpop.f32.mrf.mxu0
    %v554 = vadd.f32 0.0, %v553
    %v555 = vpop.f32.mrf.mxu0
    %556 = vdwg.mxu0
    %557 = vrot.lane.b32.xlu0 %v239, 96
    %v558 = vpop.permute.xlu0 %557
    %559 = vrot.lane.b32.xlu0 %v312, 96
    %v560 = vpop.permute.xlu0 %559
    %v561 = vsel %vm134, %v558, 0
    %v563 = vsel %vm134, %v560, 0
    %565 = vmatprep.subr.mxu0 0.0
    %566 = vmatpush1.xpose.msra.mxu0 0.0
    %567 = vmatprep.subr.mxu0 0.0
    %568 = vmatpush1.xpose.msra.mxu0 0.0
    %569 = vmatprep.subr.mxu0 0.0
    %570 = vmatpush1.xpose.msra.mxu0 0.0
    %571 = vmatprep.subr.mxu0 0.0
    %572 = vmatpush1.xpose.msra.mxu0 0.0
    %573 = vmatprep.subr.mxu0 0.0
    %574 = vmatpush1.xpose.msra.mxu0 0.0
    %575 = vmatprep.subr.mxu0 0.0
    %576 = vmatpush1.xpose.msra.mxu0 0.0
    %577 = vmatprep.subr.mxu0 0.0
    %578 = vmatpush1.xpose.msra.mxu0 0.0
    %579 = vmatprep.subr.mxu0 0.0
    %580 = vmatpush1.xpose.msra.mxu0 0.0
    %581 = vmatprep.subr.mxu0 0.0
    %582 = vmatpush1.xpose.msra.mxu0 0.0
    %583 = vmatprep.subr.mxu0 0.0
    %584 = vmatpush1.xpose.msra.mxu0 0.0
    %585 = vmatprep.subr.mxu0 0.0
    %586 = vmatpush1.xpose.msra.mxu0 0.0
    %587 = vmatprep.subr.mxu0 0.0
    %588 = vmatpush1.xpose.msra.mxu0 0.0
    %589 = vmatprep.subr.mxu0 0.0
    %590 = vmatpush1.xpose.msra.mxu0 0.0
    %591 = vmatprep.subr.mxu0 0.0
    %592 = vmatpush1.xpose.msra.mxu0 0.0
    %593 = vmatprep.subr.mxu0 0.0
    %594 = vmatpush1.xpose.msra.mxu0 0.0
    %595 = vmatprep.subr.mxu0 0.0
    %596 = vmatpush1.xpose.msra.mxu0 %v563
    %597 = vmatprep.subr.mxu0 0.0
    %598 = vmatpush2.xpose.msra.mxu0 0.0
    %599 = vmatprep.subr.mxu0 0.0
    %600 = vmatpush2.xpose.msra.mxu0 0.0
    %601 = vmatprep.subr.mxu0 0.0
    %602 = vmatpush2.xpose.msra.mxu0 0.0
    %603 = vmatprep.subr.mxu0 0.0
    %604 = vmatpush2.xpose.msra.mxu0 0.0
    %605 = vmatprep.subr.mxu0 0.0
    %606 = vmatpush2.xpose.msra.mxu0 0.0
    %607 = vmatprep.subr.mxu0 0.0
    %608 = vmatpush2.xpose.msra.mxu0 0.0
    %609 = vmatprep.subr.mxu0 0.0
    %610 = vmatpush2.xpose.msra.mxu0 0.0
    %611 = vmatprep.subr.mxu0 0.0
    %612 = vmatpush2.xpose.msra.mxu0 0.0
    %613 = vmatprep.subr.mxu0 0.0
    %614 = vmatpush2.xpose.msra.mxu0 0.0
    %615 = vmatprep.subr.mxu0 0.0
    %616 = vmatpush2.xpose.msra.mxu0 0.0
    %617 = vmatprep.subr.mxu0 0.0
    %618 = vmatpush2.xpose.msra.mxu0 0.0
    %619 = vmatprep.subr.mxu0 0.0
    %620 = vmatpush2.xpose.msra.mxu0 0.0
    %621 = vmatprep.subr.mxu0 0.0
    %622 = vmatpush2.xpose.msra.mxu0 0.0
    %623 = vmatprep.subr.mxu0 0.0
    %624 = vmatpush2.xpose.msra.mxu0 0.0
    %625 = vmatprep.subr.mxu0 0.0
    %626 = vmatpush2.xpose.msra.mxu0 0.0
    %627 = vmatprep.subr.mxu0 0.0
    %628 = vmatpush2.xpose.msra.mxu0 0.0
    %629 = vmatprep.mubr.f32.mxu0 0.0
    %630 = vmatmul.mubr.f32.gmra.mxu0 %v561
    %v631 = vpop.f32.mrf.mxu0
    %v632 = vadd.f32 0.0, %v631
    %v633 = vpop.f32.mrf.mxu0
    %634 = vdwg.mxu0
    %v635 = vmul.f32 %v632, 0.35355338
    %v636 = vsel %vm168, %v635, -inf
    %v637 = vrot.slane %v636, 4
    %v638 = vmax.f32 %v636, %v637
    %v639 = vrot.slane %v638, 2
    %v640 = vmax.f32 %v638, %v639
    %v641 = vrot.slane %v640, 1
    %v642 = vmax.f32 %v640, %v641
    %v643 = vsub.f32 %v635, %v642
    %v644 = vmul.f32 %v643, 1.442695
    %v645 = vpow.pop %v644
    %v646 = vsel %vm168, %v645, 0.0
    %v647 = vrot.slane %v646, 4
    %v648 = vadd.f32 %v646, %v647
    %v649 = vrot.slane %v648, 2
    %v650 = vadd.f32 %v648, %v649
    %v651 = vrot.slane %v650, 1
    %v652 = vadd.f32 %v650, %v651
    %v653 = vrcp.pop %v652
    %v654 = vmul.f32 %v645, %v653
    %656 = vrot.lane.b32.xlu0 %v385, 96
    %v657 = vpop.permute.xlu0 %656
    %v660 = vsel %vm168, %v654, 0
    %662 = vmatprep.subr.mxu0 0.0
    %663 = vmatpush1.msra.mxu0 0.0
    %664 = vmatprep.subr.mxu0 0.0
    %665 = vmatpush1.msra.mxu0 0.0
    %666 = vmatprep.subr.mxu0 0.0
    %667 = vmatpush1.msra.mxu0 0.0
    %668 = vmatprep.subr.mxu0 0.0
    %669 = vmatpush1.msra.mxu0 0.0
    %670 = vmatprep.subr.mxu0 0.0
    %671 = vmatpush1.msra.mxu0 0.0
    %672 = vmatprep.subr.mxu0 0.0
    %673 = vmatpush1.msra.mxu0 0.0
    %674 = vmatprep.subr.mxu0 0.0
    %675 = vmatpush1.msra.mxu0 0.0
    %676 = vmatprep.subr.mxu0 0.0
    %677 = vmatpush1.msra.mxu0 0.0
    %678 = vmatprep.subr.mxu0 0.0
    %679 = vmatpush1.msra.mxu0 0.0
    %680 = vmatprep.subr.mxu0 0.0
    %681 = vmatpush1.msra.mxu0 0.0
    %682 = vmatprep.subr.mxu0 0.0
    %683 = vmatpush1.msra.mxu0 0.0
    %684 = vmatprep.subr.mxu0 0.0
    %685 = vmatpush1.msra.mxu0 0.0
    %686 = vmatprep.subr.mxu0 0.0
    %687 = vmatpush1.msra.mxu0 0.0
    %688 = vmatprep.subr.mxu0 0.0
    %689 = vmatpush1.msra.mxu0 0.0
    %690 = vmatprep.subr.mxu0 0.0
    %691 = vmatpush1.msra.mxu0 0.0
    %692 = vmatprep.subr.mxu0 0.0
    %693 = vmatpush1.msra.mxu0 %v657
    %694 = vmatprep.subr.mxu0 0.0
    %695 = vmatpush2.msra.mxu0 0.0
    %696 = vmatprep.subr.mxu0 0.0
    %697 = vmatpush2.msra.mxu0 0.0
    %698 = vmatprep.subr.mxu0 0.0
    %699 = vmatpush2.msra.mxu0 0.0
    %700 = vmatprep.subr.mxu0 0.0
    %701 = vmatpush2.msra.mxu0 0.0
    %702 = vmatprep.subr.mxu0 0.0
    %703 = vmatpush2.msra.mxu0 0.0
    %704 = vmatprep.subr.mxu0 0.0
    %705 = vmatpush2.msra.mxu0 0.0
    %706 = vmatprep.subr.mxu0 0.0
    %707 = vmatpush2.msra.mxu0 0.0
    %708 = vmatprep.subr.mxu0 0.0
    %709 = vmatpush2.msra.mxu0 0.0
    %710 = vmatprep.subr.mxu0 0.0
    %711 = vmatpush2.msra.mxu0 0.0
    %712 = vmatprep.subr.mxu0 0.0
    %713 = vmatpush2.msra.mxu0 0.0
    %714 = vmatprep.subr.mxu0 0.0
    %715 = vmatpush2.msra.mxu0 0.0
    %716 = vmatprep.subr.mxu0 0.0
    %717 = vmatpush2.msra.mxu0 0.0
    %718 = vmatprep.subr.mxu0 0.0
    %719 = vmatpush2.msra.mxu0 0.0
    %720 = vmatprep.subr.mxu0 0.0
    %721 = vmatpush2.msra.mxu0 0.0
    %722 = vmatprep.subr.mxu0 0.0
    %723 = vmatpush2.msra.mxu0 0.0
    %724 = vmatprep.subr.mxu0 0.0
    %725 = vmatpush2.msra.mxu0 0.0
    %726 = vmatprep.mubr.f32.mxu0 0.0
    %727 = vmatmul.mubr.f32.gmra.mxu0 %v660
    %v728 = vpop.f32.mrf.mxu0
    %v729 = vadd.f32 0.0, %v728
    %v730 = vpop.f32.mrf.mxu0
    %731 = vdwg.mxu0
    %v733 = vsel %vm134, %v554, 0
    %v736 = vsel %vm134, %v729, 0
    %738 = vmatprep.subr.mxu0 0.0
    %739 = vmatpush1.msra.mxu0 0.0
    %740 = vmatprep.subr.mxu0 0.0
    %741 = vmatpush1.msra.mxu0 0.0
    %742 = vmatprep.subr.mxu0 0.0
    %743 = vmatpush1.msra.mxu0 0.0
    %744 = vmatprep.subr.mxu0 0.0
    %745 = vmatpush1.msra.mxu0 0.0
    %746 = vmatprep.subr.mxu0 0.0
    %747 = vmatpush1.msra.mxu0 0.0
    %748 = vmatprep.subr.mxu0 0.0
    %749 = vmatpush1.msra.mxu0 0.0
    %750 = vmatprep.subr.mxu0 0.0
    %751 = vmatpush1.msra.mxu0 0.0
    %752 = vmatprep.subr.mxu0 0.0
    %753 = vmatpush1.msra.mxu0 0.0
    %754 = vmatprep.subr.mxu0 0.0
    %755 = vmatpush1.msra.mxu0 0.0
    %756 = vmatprep.subr.mxu0 0.0
    %757 = vmatpush1.msra.mxu0 0.0
    %758 = vmatprep.subr.mxu0 0.0
    %759 = vmatpush1.msra.mxu0 0.0
    %760 = vmatprep.subr.mxu0 0.0
    %761 = vmatpush1.msra.mxu0 0.0
    %762 = vmatprep.subr.mxu0 0.0
    %763 = vmatpush1.msra.mxu0 %v129
    %764 = vmatprep.subr.mxu0 0.0
    %765 = vmatpush1.msra.mxu0 %v128
    %766 = vmatprep.subr.mxu0 0.0
    %767 = vmatpush1.msra.mxu0 %v127
    %768 = vmatprep.subr.mxu0 0.0
    %769 = vmatpush1.msra.mxu0 %v126
    %770 = vmatprep.subr.mxu0 0.0
    %771 = vmatpush2.msra.mxu0 0.0
    %772 = vmatprep.subr.mxu0 0.0
    %773 = vmatpush2.msra.mxu0 0.0
    %774 = vmatprep.subr.mxu0 0.0
    %775 = vmatpush2.msra.mxu0 0.0
    %776 = vmatprep.subr.mxu0 0.0
    %777 = vmatpush2.msra.mxu0 0.0
    %778 = vmatprep.subr.mxu0 0.0
    %779 = vmatpush2.msra.mxu0 0.0
    %780 = vmatprep.subr.mxu0 0.0
    %781 = vmatpush2.msra.mxu0 0.0
    %782 = vmatprep.subr.mxu0 0.0
    %783 = vmatpush2.msra.mxu0 0.0
    %784 = vmatprep.subr.mxu0 0.0
    %785 = vmatpush2.msra.mxu0 0.0
    %786 = vmatprep.subr.mxu0 0.0
    %787 = vmatpush2.msra.mxu0 0.0
    %788 = vmatprep.subr.mxu0 0.0
    %789 = vmatpush2.msra.mxu0 0.0
    %790 = vmatprep.subr.mxu0 0.0
    %791 = vmatpush2.msra.mxu0 0.0
    %792 = vmatprep.subr.mxu0 0.0
    %793 = vmatpush2.msra.mxu0 0.0
    %794 = vmatprep.subr.mxu0 0.0
    %795 = vmatpush2.msra.mxu0 0.0
    %796 = vmatprep.subr.mxu0 0.0
    %797 = vmatpush2.msra.mxu0 0.0
    %798 = vmatprep.subr.mxu0 0.0
    %799 = vmatpush2.msra.mxu0 0.0
    %800 = vmatprep.subr.mxu0 0.0
    %801 = vmatpush2.msra.mxu0 0.0
    %802 = vmatprep.mubr.f32.mxu0 0.0
    %803 = vmatmul.mubr.f32.gmra.mxu0 %v733
    %v804 = vpop.f32.mrf.mxu0
    %v805 = vadd.f32 0.0, %v804
    %v806 = vpop.f32.mrf.mxu0
    %807 = vmatprep.mubr.f32.mxu0 0.0
    %808 = vmatmul.mubr.f32.gmra.mxu0 %v736
    %v809 = vpop.f32.mrf.mxu0
    %v810 = vadd.f32 0.0, %v809
    %v811 = vpop.f32.mrf.mxu0
    %812 = vdwg.mxu0
    %v813 = vmul.f32 %v805, 0.9
    %v814 = vmul.f32 %v810, 0.9
    %v815 = vmul.f32 %v121, 0.1
    %v816 = vmul.f32 %v122, 0.1
    %v817 = vadd.f32 %v813, %v815
    %v818 = vadd.f32 %v814, %v816
    %v819 = vadd.f32 %v817, %v119
    %v820 = vadd.f32 %v818, %v120
    %v821 = vsel %vm134, %v819, 0.0
    %822 = vadd.xlane.f32.xlu0 %v821
    %v823 = vpop.xlane.xlu0 %822
    %v824 = vsel %vm134, %v820, 0.0
    %825 = vadd.xlane.f32.xlu0 %v824
    %v826 = vpop.xlane.xlu0 %825
    %v827 = vmul.f32 %v823, %v141
    %v828 = vmul.f32 %v826, %v141
    %v829 = vsub.f32 %v819, %v827
    %v830 = vsub.f32 %v820, %v828
    %v831 = vmul.f32 %v829, %v829
    %v832 = vmul.f32 %v830, %v830
    %v833 = vsel %vm134, %v831, 0.0
    %834 = vadd.xlane.f32.xlu0 %v833
    %v835 = vpop.xlane.xlu0 %834
    %v836 = vsel %vm134, %v832, 0.0
    %837 = vadd.xlane.f32.xlu0 %v836
    %v838 = vpop.xlane.xlu0 %837
    %v839 = vmul.f32 %v835, %v154
    %v840 = vmul.f32 %v838, %v154
    %v841 = vadd.f32 %v839, 0.001
    %v842 = vadd.f32 %v840, 0.001
    %v843 = vrsqrt.pop %v841
    %v844 = vrsqrt.pop %v842
    %v845 = vmul.f32 %v819, %v843
    %v846 = vmul.f32 %v820, %v844
    %v848 = vsel %vm134, %v845, 0
    %v851 = vsel %vm134, %v846, 0
    %853 = vmatprep.subr.mxu0 0.0
    %854 = vmatpush1.msra.mxu0 0.0
    %855 = vmatprep.subr.mxu0 0.0
    %856 = vmatpush1.msra.mxu0 0.0
    %857 = vmatprep.subr.mxu0 0.0
    %858 = vmatpush1.msra.mxu0 0.0
    %859 = vmatprep.subr.mxu0 0.0
    %860 = vmatpush1.msra.mxu0 0.0
    %861 = vmatprep.subr.mxu0 0.0
    %862 = vmatpush1.msra.mxu0 0.0
    %863 = vmatprep.subr.mxu0 0.0
    %864 = vmatpush1.msra.mxu0 0.0
    %865 = vmatprep.subr.mxu0 0.0
    %866 = vmatpush1.msra.mxu0 0.0
    %867 = vmatprep.subr.mxu0 0.0
    %868 = vmatpush1.msra.mxu0 0.0
    %869 = vmatprep.subr.mxu0 0.0
    %870 = vmatpush1.msra.mxu0 0.0
    %871 = vmatprep.subr.mxu0 0.0
    %872 = vmatpush1.msra.mxu0 0.0
    %873 = vmatprep.subr.mxu0 0.0
    %874 = vmatpush1.msra.mxu0 0.0
    %875 = vmatprep.subr.mxu0 0.0
    %876 = vmatpush1.msra.mxu0 0.0
    %877 = vmatprep.subr.mxu0 0.0
    %878 = vmatpush1.msra.mxu0 %v133
    %879 = vmatprep.subr.mxu0 0.0
    %880 = vmatpush1.msra.mxu0 %v132
    %881 = vmatprep.subr.mxu0 0.0
    %882 = vmatpush1.msra.mxu0 %v131
    %883 = vmatprep.subr.mxu0 0.0
    %884 = vmatpush1.msra.mxu0 %v130
    %885 = vmatprep.subr.mxu0 0.0
    %886 = vmatpush2.msra.mxu0 0.0
    %887 = vmatprep.subr.mxu0 0.0
    %888 = vmatpush2.msra.mxu0 0.0
    %889 = vmatprep.subr.mxu0 0.0
    %890 = vmatpush2.msra.mxu0 0.0
    %891 = vmatprep.subr.mxu0 0.0
    %892 = vmatpush2.msra.mxu0 0.0
    %893 = vmatprep.subr.mxu0 0.0
    %894 = vmatpush2.msra.mxu0 0.0
    %895 = vmatprep.subr.mxu0 0.0
    %896 = vmatpush2.msra.mxu0 0.0
    %897 = vmatprep.subr.mxu0 0.0
    %898 = vmatpush2.msra.mxu0 0.0
    %899 = vmatprep.subr.mxu0 0.0
    %900 = vmatpush2.msra.mxu0 0.0
    %901 = vmatprep.subr.mxu0 0.0
    %902 = vmatpush2.msra.mxu0 0.0
    %903 = vmatprep.subr.mxu0 0.0
    %904 = vmatpush2.msra.mxu0 0.0
    %905 = vmatprep.subr.mxu0 0.0
    %906 = vmatpush2.msra.mxu0 0.0
    %907 = vmatprep.subr.mxu0 0.0
    %908 = vmatpush2.msra.mxu0 0.0
    %909 = vmatprep.subr.mxu0 0.0
    %910 = vmatpush2.msra.mxu0 0.0
    %911 = vmatprep.subr.mxu0 0.0
    %912 = vmatpush2.msra.mxu0 0.0
    %913 = vmatprep.subr.mxu0 0.0
    %914 = vmatpush2.msra.mxu0 0.0
    %915 = vmatprep.subr.mxu0 0.0
    %916 = vmatpush2.msra.mxu0 0.0
    %917 = vmatprep.mubr.f32.mxu0 0.0
    %918 = vmatmul.mubr.f32.gmra.mxu0 %v848
    %v919 = vpop.f32.mrf.mxu0
    %v920 = vadd.f32 %v819, %v919
    %v921 = vpop.f32.mrf.mxu0
    %922 = vmatprep.mubr.f32.mxu0 0.0
    %923 = vmatmul.mubr.f32.gmra.mxu0 %v851
    %v924 = vpop.f32.mrf.mxu0
    %v925 = vadd.f32 %v820, %v924
    %v926 = vpop.f32.mrf.mxu0
    %927 = vdwg.mxu0
    %v928 = vmul.f32 %v920, 0.5
    %v929 = vmul.f32 %v925, 0.5
    %v930 = vmul.f32 %v920, 0.70710677
    %v931 = vmul.f32 %v925, 0.70710677
    %v932 = verf.f32.pop %v930
    %v933 = verf.f32.pop %v931
    %v934 = vadd.f32 %v932, 1.0
    %v935 = vadd.f32 %v933, 1.0
    %v936 = vmul.f32 %v928, %v934
    %v937 = vmul.f32 %v929, %v935
    %938 = vst.msk [vmem:[#allocation14] sm:$0xff] %vm134, %v936
    %939 = vst.msk [vmem:[#allocation14 + $0x8] sm:$0xff] %vm134, %v937
    %940 = vst.msk [vmem:[#allocation15] sm:$0xff] %vm134, %v817
    %941 = vst.msk [vmem:[#allocation15 + $0x8] sm:$0xff] %vm134, %v818
    // Predicated region
    $region58: #{tpu_custom_call.1} parent=1 // pred_check
      _
    $region59: #{tpu_custom_call.1} parent=1 // pred_check_branch
      %943 = sbr.rel (0) target = $region61
    $region60: #{tpu_custom_call.1} parent=1 // pred_region
      %s945 = ssub.s32 256, 256
      %946 = vsyncadd [#allocation4], %s945
      %s947 = sshll.u32 [#allocation14], 4
      %s948 = int_to_ptr.vmem [resolvable:$true] %s947
      %953 = dma.vmem_to_hbm [thread:$0]  %s948, 256, %s7, [#allocation4], 128, 128, 8
    $region61: #{tpu_custom_call.1} parent=1 // pred_fallthru
      _
    // Predicated region
    $region62: #{tpu_custom_call.1} parent=1 // pred_check
      _
    $region63: #{tpu_custom_call.1} parent=1 // pred_check_branch
      %955 = sbr.rel (0) target = $region65
    $region64: #{tpu_custom_call.1} parent=1 // pred_region
      %s957 = ssub.s32 256, 256
      %958 = vsyncadd [#allocation16], %s957
      %s959 = sshll.u32 [#allocation15], 4
      %s960 = int_to_ptr.vmem [resolvable:$true] %s959
      %965 = dma.vmem_to_hbm [thread:$0]  %s960, 256, %s8, [#allocation16], 128, 128, 8
    $region65: #{tpu_custom_call.1} parent=1 // pred_fallthru
      _
    // Predicated region
    $region66: #{tpu_custom_call.1} parent=1 // pred_check
      _
    $region67: #{tpu_custom_call.1} parent=1 // pred_check_branch
      %967 = sbr.rel (0) target = $region69
    $region68: #{tpu_custom_call.1} parent=1 // pred_region
      %968 = dma.done [#allocation4], 256
    $region69: #{tpu_custom_call.1} parent=1 // pred_fallthru
      _
    // Predicated region
    $region70: #{tpu_custom_call.1} parent=1 // pred_check
      _
    $region71: #{tpu_custom_call.1} parent=1 // pred_check_branch
      %970 = sbr.rel (0) target = $region73
    $region72: #{tpu_custom_call.1} parent=1 // pred_region
      %971 = dma.done [#allocation16], 256
    $region73: #{tpu_custom_call.1} parent=1 // pred_fallthru
      _
    %972 = vsyncpa [#allocation3], 1
    %973 = vsyncpa [#allocation6], 1
    %974 = vsyncpa [#allocation9], 1
    %975 = vsyncpa [#allocation12], 1
    %976 = vsyncpa [#allocation4], 1
    %977 = vsyncpa [#allocation16], 1

</llo_original>
